<compile_context>
chip_gen: v6e
topology: v6e:2x2x1
jax: 0.10.0
libtpu: 0.0.40
codegen_flags: <defaults>
</compile_context>

<pallas_src>
import jax
import jax.numpy as jnp
from jax.experimental import pallas as pl
from jax.experimental.pallas import tpu as pltpu


# ----------------------------------------------------------------------------
# Pallas kernel: ECG encoder linear + fused CLIP head (proj + normalize + loss)
# ----------------------------------------------------------------------------
def ecgclip_head_kernel(ecg_pooled_ref, txt_feat_ref, w_enc_ref, w_fused_ref,
                        ecg_emb_ref, txt_emb_ref, loss_ref):
    f32 = jnp.float32

    # --- ECG encoder linear (stub). Bias already folded into w_enc (ones col
    #     appended to the pooled features in the wrapper). ----------------------
    ecg_f = jnp.dot(ecg_pooled_ref[...], w_enc_ref[...],
                    preferred_element_type=f32)                       # [B, De]
    txt_f = txt_feat_ref[...]                                         # [B, Dt]

    B, De = ecg_f.shape
    Dt = txt_f.shape[1]

    # --- Fused projection: ONE block-diagonal MXU pass for both branches ------
    #   x       = [[ecg_f, 1, 0,     0],
    #              [0,     0, txt_f, 1]]            shape (2B, De + 1 + Dt + 1)
    #   w_fused = [w_ecg_proj; b_ecg_proj; w_text_proj; b_text_proj]
    ones_b = jnp.ones((B, 1), f32)
    x_top = jnp.concatenate([ecg_f, ones_b, jnp.zeros((B, Dt + 1), f32)], axis=1)
    x_bot = jnp.concatenate([jnp.zeros((B, De + 1), f32), txt_f, ones_b], axis=1)
    x = jnp.concatenate([x_top, x_bot], axis=0)                       # [2B, K]

    # bf16 MXU inputs, f32 accumulation (full-rate on v5e/v6e/v7x); all
    # post-matmul elementwise math stays f32 (v5e VPU/EUP have no bf16).
    emb = jnp.dot(x.astype(jnp.bfloat16), w_fused_ref[...],
                  preferred_element_type=f32)                         # [2B, P]

    # --- L2 normalize (F.normalize(p=2, dim=1), eps = 1e-12) ------------------
    # x / max(||x||, 1e-12)  ==  x * rsqrt(sum(x^2) + 1e-24); rsqrt -> EUP slot.
    sumsq = jnp.sum(emb * emb, axis=-1, keepdims=True)                # [2B, 1]
    emb_n = emb * jax.lax.rsqrt(sumsq + 1e-24)

    ecg_emb_ref[...] = emb_n[:B]
    txt_emb_ref[...] = emb_n[B:]

    # --- Symmetric clip loss ---------------------------------------------------
    # The reference clip_loss applies cross_entropy DIRECTLY to the normalized
    # embedding matrices with labels = arange(B) (no e @ t.T similarity matrix;
    # temperature / logit_scale is passed but unused) — matched exactly here,
    # computed once on the stacked (2B, P) slab.
    P = emb_n.shape[-1]
    row = jax.lax.broadcasted_iota(jnp.int32, (2 * B, P), 0)
    col = jax.lax.broadcasted_iota(jnp.int32, (2 * B, P), 1)
    label = jnp.where(row < B, row, row - B)          # arange(B) for each half
    tgt_mask = (label == col).astype(f32)

    # |logits| <= 1 after L2 normalization, so exp() needs no max-shift.
    lse = jnp.log(jnp.sum(jnp.exp(emb_n), axis=-1, keepdims=True))    # [2B, 1]
    tgt = jnp.sum(emb_n * tgt_mask, axis=-1, keepdims=True)           # [2B, 1]
    # (mean over ecg half + mean over text half) / 2  ==  sum / (2B)
    loss_ref[0, 0] = jnp.sum(lse - tgt) * (0.5 / B)


def ecgclip_head(ecg_pooled, txt_feat, w_enc, b_enc,
                 w_ecg_proj, b_ecg_proj, w_text_proj, b_text_proj):
    B = ecg_pooled.shape[0]
    De = w_ecg_proj.shape[0]
    P = w_ecg_proj.shape[1]
    # clip_loss uses labels = arange(B) over P classes (as in the reference).
    assert P >= B, "clip_loss labels arange(B) require proj_dim >= batch"

    f32 = jnp.float32
    ones = jnp.ones((B, 1), f32)
    # Fold the encoder bias into its weight (ones column on the features).
    ecg_pooled_aug = jnp.concatenate([ecg_pooled.astype(f32), ones], axis=1)
    w_enc_aug = jnp.concatenate([w_enc, b_enc.reshape(1, De)], axis=0)
    # Fused projection weight with both projection biases folded in as rows.
    w_fused = jnp.concatenate(
        [w_ecg_proj, b_ecg_proj.reshape(1, P),
         w_text_proj, b_text_proj.reshape(1, P)], axis=0).astype(jnp.bfloat16)

    vmem = pl.BlockSpec(memory_space=pltpu.MemorySpace.VMEM)
    smem = pl.BlockSpec(memory_space=pltpu.MemorySpace.SMEM)

    out_shapes = (
        jax.ShapeDtypeStruct((B, P), f32),      # ecg_emb
        jax.ShapeDtypeStruct((B, P), f32),      # text_emb
        jax.ShapeDtypeStruct((1, 1), f32),      # loss (scalar, SMEM)
    )

    # TODO(synk): at production CLIP scale (large B / P / D) replace this
    # single full-array block with batch tiling (grid over B, SMEM loss
    # accumulator finalized with pl.when) — v7x only has 64 MiB VMEM.
    ecg_emb, txt_emb, loss = pl.pallas_call(
        ecgclip_head_kernel,
        out_shape=out_shapes,
        in_specs=[vmem, vmem, vmem, vmem],
        out_specs=(vmem, vmem, smem),
    )(ecg_pooled_aug, txt_feat.astype(f32), w_enc_aug, w_fused)

    return loss[0, 0], ecg_emb, txt_emb


# ----------------------------------------------------------------------------
# Encoder stubs (plain JAX glue; reference architectures not provided)
# ----------------------------------------------------------------------------
def ecg_encoder_pool(ecg_input):
    # TODO(synk): ECGEncoder definition is not provided by the module; stubbed
    # as temporal mean-pool; its linear layer runs inside the Pallas kernel.
    return jnp.mean(ecg_input, axis=-1)                       # [B, leads]


def text_encoder(input_ids, attention_mask, token_type_ids, tok_emb, type_emb):
    # TODO(synk): BertModel (Bio_ClinicalBERT) is not re-implemented; stubbed
    # as token + token-type embedding lookup (gather stays in XLA) with
    # attention-mask mean pooling.
    emb = tok_emb[input_ids] + type_emb[token_type_ids]       # [B, S, H]
    mask = attention_mask.astype(jnp.float32)[..., None]      # [B, S, 1]
    summed = jnp.sum(emb * mask, axis=1)
    denom = jnp.maximum(jnp.sum(mask, axis=1), 1.0)
    return summed / denom                                     # [B, H]


# ----------------------------------------------------------------------------
# ECGCLIP forward
# ----------------------------------------------------------------------------
def ecgclip_forward(params, ecg_input, input_ids, attention_mask, token_type_ids):
    ecg_pooled = ecg_encoder_pool(ecg_input)
    txt_feat = text_encoder(input_ids, attention_mask, token_type_ids,
                            params["tok_emb"], params["type_emb"])
    # Note: logit_scale = exp(log(1/temperature)) is a module parameter but is
    # unused inside the reference clip_loss — matched here.
    return ecgclip_head(
        ecg_pooled, txt_feat,
        params["w_enc"], params["b_enc"],
        params["w_ecg_proj"], params["b_ecg_proj"],
        params["w_text_proj"], params["b_text_proj"],
    )


if __name__ == "__main__":
    # Small, deterministic example shapes.
    B = 8            # batch
    LEADS = 12       # ECG leads
    SIG_LEN = 128    # ECG signal length
    SEQ = 16         # text sequence length
    VOCAB = 64       # stub vocabulary
    D_ECG = 32       # ecg_encoder.d_model
    D_TXT = 32       # text_encoder hidden size
    PROJ = 128       # proj_dim (>= B so CE labels are valid)

    key = jax.random.PRNGKey(0)
    ks = jax.random.split(key, 10)

    params = {
        "w_enc":       0.1 * jax.random.normal(ks[0], (LEADS, D_ECG), jnp.float32),
        "b_enc":       jnp.zeros((D_ECG,), jnp.float32),
        "tok_emb":     0.1 * jax.random.normal(ks[1], (VOCAB, D_TXT), jnp.float32),
        "type_emb":    0.1 * jax.random.normal(ks[2], (2, D_TXT), jnp.float32),
        "w_ecg_proj":  0.1 * jax.random.normal(ks[3], (D_ECG, PROJ), jnp.float32),
        "b_ecg_proj":  0.01 * jax.random.normal(ks[4], (1, PROJ), jnp.float32),
        "w_text_proj": 0.1 * jax.random.normal(ks[5], (D_TXT, PROJ), jnp.float32),
        "b_text_proj": 0.01 * jax.random.normal(ks[6], (1, PROJ), jnp.float32),
    }

    ecg_input = jax.random.normal(ks[7], (B, LEADS, SIG_LEN), jnp.float32)
    input_ids = jax.random.randint(ks[8], (B, SEQ), 0, VOCAB, jnp.int32)
    attention_mask = jnp.ones((B, SEQ), jnp.int32).at[:, SEQ // 2:].set(
        jax.random.randint(ks[9], (B, SEQ - SEQ // 2), 0, 2, jnp.int32))
    token_type_ids = jnp.zeros((B, SEQ), jnp.int32)

    fwd = jax.jit(ecgclip_forward)
    loss, ecg_emb, text_emb = fwd(
        params, ecg_input, input_ids, attention_mask, token_type_ids)
    jax.block_until_ready((loss, ecg_emb, text_emb))

    assert ecg_emb.shape == (B, PROJ) and text_emb.shape == (B, PROJ)
    # embeddings are L2-normalized rows
    assert bool(jnp.all(jnp.abs(jnp.sum(ecg_emb * ecg_emb, axis=1) - 1.0) < 1e-3))
    assert bool(jnp.isfinite(loss))
    print("KERNEL_OK")
</pallas_src>

<mosaic_0001>
module attributes {stable_mosaic.version = 11 : i64} {
  func.func @ecgclip_head_kernel(%arg0: memref<8x13xf32, #tpu.memory_space<vmem>>, %arg1: memref<8x32xf32, #tpu.memory_space<vmem>>, %arg2: memref<13x32xf32, #tpu.memory_space<vmem>>, %arg3: memref<66x128xbf16, #tpu.memory_space<vmem>>, %arg4: memref<8x128xf32, #tpu.memory_space<vmem>>, %arg5: memref<8x128xf32, #tpu.memory_space<vmem>>, %arg6: memref<1x1xf32, #tpu.memory_space<smem>>) attributes {dimension_semantics = [], scalar_prefetch = 0 : i64, scratch_operands = 0 : i64, tpu.core_type = #tpu.core_type<tc>} {
    %c0 = arith.constant 0 : index
    %c0_0 = arith.constant 0 : index
    %0 = vector.load %arg0[%c0, %c0_0] : memref<8x13xf32, #tpu.memory_space<vmem>>, vector<8x13xf32>
    %c0_1 = arith.constant 0 : index
    %c0_2 = arith.constant 0 : index
    %1 = vector.load %arg2[%c0_1, %c0_2] : memref<13x32xf32, #tpu.memory_space<vmem>>, vector<13x32xf32>
    %cst = arith.constant dense<0.000000e+00> : vector<8x32xf32>
    %2 = tpu.matmul %0, %1, %cst {dimension_numbers = #tpu.dot_dimension_numbers<[1], [0], [0], [1], [0, 0, 1, 1], [], []>} : vector<8x13xf32>, vector<13x32xf32>, vector<8x32xf32> -> vector<8x32xf32>
    %c0_3 = arith.constant 0 : index
    %c0_4 = arith.constant 0 : index
    %3 = vector.load %arg1[%c0_3, %c0_4] : memref<8x32xf32, #tpu.memory_space<vmem>>, vector<8x32xf32>
    %cst_5 = arith.constant 1.000000e+00 : f32
    %4 = vector.broadcast %cst_5 : f32 to vector<8x1xf32>
    %cst_6 = arith.constant 0.000000e+00 : f32
    %5 = vector.broadcast %cst_6 : f32 to vector<8x33xf32>
    %6 = tpu.concatenate %2, %4, %5 in 1 : vector<8x32xf32>, vector<8x1xf32>, vector<8x33xf32> -> vector<8x66xf32>
    %cst_7 = arith.constant 0.000000e+00 : f32
    %7 = vector.broadcast %cst_7 : f32 to vector<8x33xf32>
    %8 = tpu.concatenate %7, %3, %4 in 1 : vector<8x33xf32>, vector<8x32xf32>, vector<8x1xf32> -> vector<8x66xf32>
    %9 = tpu.concatenate %6, %8 in 0 : vector<8x66xf32>, vector<8x66xf32> -> vector<16x66xf32>
    %10 = arith.truncf %9 : vector<16x66xf32> to vector<16x66xbf16>
    %c0_8 = arith.constant 0 : index
    %c0_9 = arith.constant 0 : index
    %11 = vector.load %arg3[%c0_8, %c0_9] : memref<66x128xbf16, #tpu.memory_space<vmem>>, vector<66x128xbf16>
    %cst_10 = arith.constant dense<0.000000e+00> : vector<16x128xf32>
    %12 = tpu.matmul %10, %11, %cst_10 {dimension_numbers = #tpu.dot_dimension_numbers<[1], [0], [0], [1], [0, 0, 1, 1], [], []>} : vector<16x66xbf16>, vector<66x128xbf16>, vector<16x128xf32> -> vector<16x128xf32>
    %13 = arith.mulf %12, %12 : vector<16x128xf32>
    %cst_11 = arith.constant dense<0.000000e+00> : vector<16xf32>
    %14 = vector.multi_reduction <add>, %13, %cst_11 [1] : vector<16x128xf32> to vector<16xf32>
    %15 = vector.shape_cast %14 : vector<16xf32> to vector<16x1xf32>
    %cst_12 = arith.constant 1.000000e-24 : f32
    %16 = vector.broadcast %cst_12 : f32 to vector<16x1xf32>
    %17 = arith.addf %15, %16 : vector<16x1xf32>
    %18 = math.rsqrt %17 : vector<16x1xf32>
    %19 = vector.broadcast %18 : vector<16x1xf32> to vector<16x128xf32>
    %20 = arith.mulf %12, %19 : vector<16x128xf32>
    %21 = vector.extract_strided_slice %20 {offsets = [0, 0], sizes = [8, 128], strides = [1, 1]} : vector<16x128xf32> to vector<8x128xf32>
    %c0_13 = arith.constant 0 : index
    %c0_14 = arith.constant 0 : index
    %22 = vector.load %arg4[%c0_13, %c0_14] : memref<8x128xf32, #tpu.memory_space<vmem>>, vector<8x128xf32>
    tpu.vector_store %arg4[%c0_13, %c0_14], %21 {strides = array<i32>} : memref<8x128xf32, #tpu.memory_space<vmem>>, vector<8x128xf32>,
    %23 = vector.extract_strided_slice %20 {offsets = [8, 0], sizes = [8, 128], strides = [1, 1]} : vector<16x128xf32> to vector<8x128xf32>
    %c0_15 = arith.constant 0 : index
    %c0_16 = arith.constant 0 : index
    %24 = vector.load %arg5[%c0_15, %c0_16] : memref<8x128xf32, #tpu.memory_space<vmem>>, vector<8x128xf32>
    tpu.vector_store %arg5[%c0_15, %c0_16], %23 {strides = array<i32>} : memref<8x128xf32, #tpu.memory_space<vmem>>, vector<8x128xf32>,
    %25 = tpu.iota {dimensions = array<i32: 0>} : vector<16x128xi32>
    %26 = tpu.iota {dimensions = array<i32: 1>} : vector<16x128xi32>
    %c8_i32 = arith.constant 8 : i32
    %27 = vector.broadcast %c8_i32 : i32 to vector<16x128xi32>
    %28 = arith.cmpi slt, %25, %27 : vector<16x128xi32>
    %c8_i32_17 = arith.constant 8 : i32
    %29 = vector.broadcast %c8_i32_17 : i32 to vector<16x128xi32>
    %30 = arith.subi %25, %29 : vector<16x128xi32>
    %31 = arith.select %28, %25, %30 : vector<16x128xi1>, vector<16x128xi32>
    %32 = arith.cmpi eq, %31, %26 : vector<16x128xi32>
    %33 = arith.extui %32 : vector<16x128xi1> to vector<16x128xi32>
    %34 = arith.sitofp %33 : vector<16x128xi32> to vector<16x128xf32>
    %35 = math.exp %20 : vector<16x128xf32>
    %cst_18 = arith.constant dense<0.000000e+00> : vector<16xf32>
    %36 = vector.multi_reduction <add>, %35, %cst_18 [1] : vector<16x128xf32> to vector<16xf32>
    %37 = vector.shape_cast %36 : vector<16xf32> to vector<16x1xf32>
    %38 = math.log %37 : vector<16x1xf32>
    %39 = arith.mulf %20, %34 : vector<16x128xf32>
    %cst_19 = arith.constant dense<0.000000e+00> : vector<16xf32>
    %40 = vector.multi_reduction <add>, %39, %cst_19 [1] : vector<16x128xf32> to vector<16xf32>
    %41 = vector.shape_cast %40 : vector<16xf32> to vector<16x1xf32>
    %42 = arith.subf %38, %41 : vector<16x1xf32>
    %43 = vector.shape_cast %42 : vector<16x1xf32> to vector<1x16x1xf32>
    %cst_20 = arith.constant dense<0.000000e+00> : vector<1xf32>
    %44 = vector.multi_reduction <add>, %43, %cst_20 [1, 2] : vector<1x16x1xf32> to vector<1xf32>
    %45 = vector.shape_cast %44 : vector<1xf32> to vector<1x1x1xf32>
    %46 = vector.extract %45[0, 0, 0] : f32 from vector<1x1x1xf32>
    %cst_21 = arith.constant 6.250000e-02 : f32
    %47 = arith.mulf %46, %cst_21 : f32
    %c0_22 = arith.constant 0 : index
    %c0_23 = arith.constant 0 : index
    %48 = memref.load %arg6[%c0_22, %c0_23] : memref<1x1xf32, #tpu.memory_space<smem>>
    memref.store %47, %arg6[%c0_22, %c0_23] : memref<1x1xf32, #tpu.memory_space<smem>>
    return
  }
}

</mosaic_0001>

<llo_original>
// kernel: ecgclip_forward.1
$region0: #{ecgclip_forward.1}
  #allocation0 [shape = 'u32[]', space=smem, size = 0x4, offset = 0x4, fixed_abs, tag = 'smem constant byte address 0x4 - core index']
  #allocation1 [shape = 'u32[144,128]{1,0:T(1,128)}', space=vmem, size = 0x12000, scoped, tag = 'internal scratch']
  %s0 = inlined_call_operand.vmem [shape: f32[8,13], index: 0, kind: input, shape index: {}]
  %s1 = inlined_call_operand.vmem [shape: f32[8,32], index: 1, kind: input, shape index: {}]
  %s2 = inlined_call_operand.vmem [shape: f32[13,32], index: 2, kind: input, shape index: {}]
  %s3 = inlined_call_operand.vmem [shape: bf16[66,128], index: 3, kind: input, shape index: {}]
  %s4 = inlined_call_operand.hbm [shape: f32[8,128], index: 4, kind: output, shape index: {0}]
  %s5 = inlined_call_operand.hbm [shape: f32[8,128], index: 5, kind: output, shape index: {1}]
  %s6 = inlined_call_operand.hbm [shape: f32[1,1], index: 6, kind: output, shape index: {2}]
  %7 = xla_tuple %s4, %s5, %s6
  %s8 = sld [smem:[#allocation0]]
  $region42: #{ecgclip_forward.1} parent=0
    _
  %s10 = ssub.s32 1, %s8
  %s11 = scalar_select 0, %s10, %s8
  $region1: #{ecgclip_forward.1} parent=0
    #allocation2 [shape = 'u8[4096]{0}', space=vmem, size = 0x1000, scoped, tag = 'output window, operand 0, single buffered']
    #allocation3 [shape = 's32[1]{0}', space=sflag, size = 0x4, scoped, tag = 'scoped memory for ecgclip_forward.1']
    #allocation4 [shape = 's32[1]{0}', space=sflag, size = 0x4, scoped, tag = 'scoped memory for ecgclip_forward.1']
    #allocation5 [shape = 'u8[4096]{0}', space=vmem, size = 0x1000, scoped, tag = 'output window, operand 1, single buffered']
    #allocation6 [shape = 's32[1]{0}', space=sflag, size = 0x4, scoped, tag = 'scoped memory for ecgclip_forward.1']
    #allocation7 [shape = 'u8[512]{0}', space=smem, size = 0x200, scoped, tag = 'output window, operand 2, single buffered']
    %12 = vsyncpa [#allocation3], 0
    %13 = vsyncpa [#allocation6], 0
    %14 = vsyncpa [#allocation4], 0
    // Predicated region
    $region2: #{ecgclip_forward.1} parent=1 // pred_check
      _
    $region3: #{ecgclip_forward.1} parent=1 // pred_check_branch
      %16 = sbr.rel (0) target = $region5
    $region4: #{ecgclip_forward.1} parent=1 // pred_region
      _
    $region5: #{ecgclip_forward.1} parent=1 // pred_fallthru
      _
    // Predicated region
    $region6: #{ecgclip_forward.1} parent=1 // pred_check
      _
    $region7: #{ecgclip_forward.1} parent=1 // pred_check_branch
      %18 = sbr.rel (0) target = $region9
    $region8: #{ecgclip_forward.1} parent=1 // pred_region
      _
    $region9: #{ecgclip_forward.1} parent=1 // pred_fallthru
      _
    // Predicated region
    $region10: #{ecgclip_forward.1} parent=1 // pred_check
      _
    $region11: #{ecgclip_forward.1} parent=1 // pred_check_branch
      %20 = sbr.rel (0) target = $region13
    $region12: #{ecgclip_forward.1} parent=1 // pred_region
      _
    $region13: #{ecgclip_forward.1} parent=1 // pred_fallthru
      _
    // Predicated region
    $region14: #{ecgclip_forward.1} parent=1 // pred_check
      _
    $region15: #{ecgclip_forward.1} parent=1 // pred_check_branch
      %22 = sbr.rel (0) target = $region17
    $region16: #{ecgclip_forward.1} parent=1 // pred_region
      _
    $region17: #{ecgclip_forward.1} parent=1 // pred_fallthru
      _
    %v24 = vld [vmem:[%s0] sm:$0xff]
    %v25 = vld [vmem:[%s2] sm:$0xff]
    %v26 = vld [vmem:[%s2 + $0x8] sm:$0x1f]
    %vm27 = vcmask 105472
    %v29 = vsel %vm27, %v24, 0
    %vm31 = vcmask 1044480
    %v33 = vsel %vm31, %v26, 0
    %35 = vmatprep.subr.mxu0 0.0
    %36 = vmatpush1.msra.mxu0 0.0
    %37 = vmatprep.subr.mxu0 0.0
    %38 = vmatpush1.msra.mxu0 0.0
    %39 = vmatprep.subr.mxu0 0.0
    %40 = vmatpush1.msra.mxu0 0.0
    %41 = vmatprep.subr.mxu0 0.0
    %42 = vmatpush1.msra.mxu0 0.0
    %43 = vmatprep.subr.mxu0 0.0
    %44 = vmatpush1.msra.mxu0 0.0
    %45 = vmatprep.subr.mxu0 0.0
    %46 = vmatpush1.msra.mxu0 0.0
    %47 = vmatprep.subr.mxu0 0.0
    %48 = vmatpush1.msra.mxu0 0.0
    %49 = vmatprep.subr.mxu0 0.0
    %50 = vmatpush1.msra.mxu0 0.0
    %51 = vmatprep.subr.mxu0 0.0
    %52 = vmatpush1.msra.mxu0 0.0
    %53 = vmatprep.subr.mxu0 0.0
    %54 = vmatpush1.msra.mxu0 0.0
    %55 = vmatprep.subr.mxu0 0.0
    %56 = vmatpush1.msra.mxu0 0.0
    %57 = vmatprep.subr.mxu0 0.0
    %58 = vmatpush1.msra.mxu0 0.0
    %59 = vmatprep.subr.mxu0 0.0
    %60 = vmatpush1.msra.mxu0 0.0
    %61 = vmatprep.subr.mxu0 0.0
    %62 = vmatpush1.msra.mxu0 0.0
    %63 = vmatprep.subr.mxu0 0.0
    %64 = vmatpush1.msra.mxu0 %v33
    %65 = vmatprep.subr.mxu0 0.0
    %66 = vmatpush1.msra.mxu0 %v25
    %67 = vmatprep.subr.mxu0 0.0
    %68 = vmatpush2.msra.mxu0 0.0
    %69 = vmatprep.subr.mxu0 0.0
    %70 = vmatpush2.msra.mxu0 0.0
    %71 = vmatprep.subr.mxu0 0.0
    %72 = vmatpush2.msra.mxu0 0.0
    %73 = vmatprep.subr.mxu0 0.0
    %74 = vmatpush2.msra.mxu0 0.0
    %75 = vmatprep.subr.mxu0 0.0
    %76 = vmatpush2.msra.mxu0 0.0
    %77 = vmatprep.subr.mxu0 0.0
    %78 = vmatpush2.msra.mxu0 0.0
    %79 = vmatprep.subr.mxu0 0.0
    %80 = vmatpush2.msra.mxu0 0.0
    %81 = vmatprep.subr.mxu0 0.0
    %82 = vmatpush2.msra.mxu0 0.0
    %83 = vmatprep.subr.mxu0 0.0
    %84 = vmatpush2.msra.mxu0 0.0
    %85 = vmatprep.subr.mxu0 0.0
    %86 = vmatpush2.msra.mxu0 0.0
    %87 = vmatprep.subr.mxu0 0.0
    %88 = vmatpush2.msra.mxu0 0.0
    %89 = vmatprep.subr.mxu0 0.0
    %90 = vmatpush2.msra.mxu0 0.0
    %91 = vmatprep.subr.mxu0 0.0
    %92 = vmatpush2.msra.mxu0 0.0
    %93 = vmatprep.subr.mxu0 0.0
    %94 = vmatpush2.msra.mxu0 0.0
    %95 = vmatprep.subr.mxu0 0.0
    %96 = vmatpush2.msra.mxu0 0.0
    %97 = vmatprep.subr.mxu0 0.0
    %98 = vmatpush2.msra.mxu0 0.0
    %99 = vmatprep.mubr.f32.mxu0 0.0
    %100 = vmatmul.mubr.f32.gmra.mxu0 %v29
    %v101 = vpop.f32.mrf.mxu0
    %v102 = vadd.f32 0.0, %v101
    %v103 = vpop.f32.mrf.mxu0
    %104 = vdwg.mxu0
    %v105 = vld [vmem:[%s1] sm:$0xff]
    %vm106 = vcmask 261120
    %v107 = vsel %vm106, %v102, 1.0
    %vm108 = vcmask 269312
    %v109 = vsel %vm108, %v107, 0.0
    %111 = vrot.lane.b32.xlu0 %v105, 33
    %v112 = vpop.permute.xlu0 %111
    %v114 = vsel %vm108, 0.0, %v112
    %vm115 = vcmask 531456
    %v116 = vsel %vm115, %v114, 1.0
    %v117 = vpack.c.bf16 %v116, %v109
    %v118 = vld [vmem:[%s3] sm:$0xf]
    %v119 = vld [vmem:[%s3 + $0x4] sm:$0xf]
    %v120 = vld [vmem:[%s3 + $0x8] sm:$0xf]
    %v121 = vld [vmem:[%s3 + $0xc] sm:$0xf]
    %v122 = vld [vmem:[%s3 + $0x10] sm:$0xf]
    %v123 = vld [vmem:[%s3 + $0x14] sm:$0xf]
    %v124 = vld [vmem:[%s3 + $0x18] sm:$0xf]
    %v125 = vld [vmem:[%s3 + $0x1c] sm:$0xf]
    %v126 = vld [vmem:[%s3 + $0x20] sm:$0x1]
    %v136 = vunpack.c.l.b16 %v118
    %v137 = vunpack.c.l.b16 %v119
    %v138 = vunpack.c.l.b16 %v120
    %v139 = vunpack.c.l.b16 %v121
    %v140 = vunpack.c.l.b16 %v122
    %v141 = vunpack.c.l.b16 %v123
    %v142 = vunpack.c.l.b16 %v124
    %v143 = vunpack.c.l.b16 %v125
    %v144 = vunpack.c.l.b16 %v126
    %v145 = vpack.c.b16 %v137, %v136
    %v146 = vpack.c.b16 %v139, %v138
    %v147 = vpack.c.b16 %v141, %v140
    %v148 = vpack.c.b16 %v143, %v142
    %v149 = vpack.c.b16 %v144, %v144
    %vm154 = vcmask 539648
    %v156 = vsel %vm154, %v117, 0
    %vm158 = vcmask 1040384
    %v160 = vsel %vm158, %v149, 0
    %162 = vmatprep.subr.bf16.mxu0 0
    %163 = vmatpush1.bf16.msra.mxu0 0
    %164 = vmatprep.subr.bf16.mxu0 0
    %165 = vmatpush1.bf16.msra.mxu0 0
    %166 = vmatprep.subr.bf16.mxu0 0
    %167 = vmatpush1.bf16.msra.mxu0 0
    %168 = vmatprep.subr.bf16.mxu0 0
    %169 = vmatpush1.bf16.msra.mxu0 %v160
    %170 = vmatprep.subr.bf16.mxu0 0
    %171 = vmatpush1.bf16.msra.mxu0 %v148
    %172 = vmatprep.subr.bf16.mxu0 0
    %173 = vmatpush1.bf16.msra.mxu0 %v147
    %174 = vmatprep.subr.bf16.mxu0 0
    %175 = vmatpush1.bf16.msra.mxu0 %v146
    %176 = vmatprep.subr.bf16.mxu0 0
    %177 = vmatpush1.bf16.msra.mxu0 %v145
    %178 = vmatprep.subr.bf16.mxu0 0
    %179 = vmatpush2.bf16.msra.mxu0 0
    %180 = vmatprep.subr.bf16.mxu0 0
    %181 = vmatpush2.bf16.msra.mxu0 0
    %182 = vmatprep.subr.bf16.mxu0 0
    %183 = vmatpush2.bf16.msra.mxu0 0
    %184 = vmatprep.subr.bf16.mxu0 0
    %185 = vmatpush2.bf16.msra.mxu0 0
    %186 = vmatprep.subr.bf16.mxu0 0
    %187 = vmatpush2.bf16.msra.mxu0 0
    %188 = vmatprep.subr.bf16.mxu0 0
    %189 = vmatpush2.bf16.msra.mxu0 0
    %190 = vmatprep.subr.bf16.mxu0 0
    %191 = vmatpush2.bf16.msra.mxu0 0
    %192 = vmatprep.subr.bf16.mxu0 0
    %193 = vmatpush2.bf16.msra.mxu0 0
    %194 = vmatprep.mubr.bf16.mxu0 0
    %195 = vmatmul.mubr.bf16.gmra.mxu0 %v156
    %v196 = vpop.f32.mrf.mxu0
    %v197 = vadd.f32 0.0, %v196
    %v198 = vpop.f32.mrf.mxu0
    %v199 = vpop.f32.mrf.mxu0
    %v200 = vadd.f32 0.0, %v199
    %v201 = vpop.f32.mrf.mxu0
    %202 = vdwg.mxu0
    %v203 = vmul.f32 %v197, %v197
    %v204 = vmul.f32 %v200, %v200
    %205 = vadd.xlane.f32.xlu0 %v203
    %v206 = vpop.xlane.xlu0 %205
    %207 = vadd.xlane.f32.xlu0 %v204
    %v208 = vpop.xlane.xlu0 %207
    %v209 = vadd.f32 %v206, 1e-24
    %v210 = vadd.f32 %v208, 1e-24
    %v211 = vrsqrt.pop %v209
    %v212 = vrsqrt.pop %v210
    %v213 = vmul.f32 %v197, %v211
    %v214 = vmul.f32 %v200, %v212
    %215 = vst [vmem:[#allocation2] sm:$0xff] %v213
    %216 = vst [vmem:[#allocation5] sm:$0xff] %v214
    %v217 = vlaneseq
    %v218 = vshrl.u32 %v217, 7
    %v219 = vadd.s32 %v218, 8
    %v220 = vlaneseq
    %v221 = vand.u32 %v220, 127
    %vm222 = vcmp.lt.s32.totalorder %v218, 8
    %vm223 = vcmp.lt.s32.totalorder %v219, 8
    %v224 = vsub.s32 %v218, 8
    %v225 = vsel %vm222, %v218, %v224
    %v226 = vsel %vm223, %v219, %v218
    %vm227 = vcmp.eq.s32.totalorder %v225, %v221
    %vm228 = vcmp.eq.s32.totalorder %v226, %v221
    %v229 = vsel %vm227, 1, 0
    %v230 = vsel %vm228, 1, 0
    %v231 = vcvt.s32.f32 %v229
    %v232 = vcvt.s32.f32 %v230
    %v233 = vmul.f32 %v213, 1.442695
    %v234 = vpow.pop %v233
    %v235 = vmul.f32 %v214, 1.442695
    %v236 = vpow.pop %v235
    %237 = vadd.xlane.f32.xlu0 %v234
    %v238 = vpop.xlane.xlu0 %237
    %239 = vadd.xlane.f32.xlu0 %v236
    %v240 = vpop.xlane.xlu0 %239
    %v241 = vlog2.pop %v238
    %v242 = vmul.f32 %v241, 0.6931472
    %v243 = vlog2.pop %v240
    %v244 = vmul.f32 %v243, 0.6931472
    %v245 = vmul.f32 %v213, %v231
    %v246 = vmul.f32 %v214, %v232
    %247 = vadd.xlane.f32.xlu0 %v245
    %v248 = vpop.xlane.xlu0 %247
    %249 = vadd.xlane.f32.xlu0 %v246
    %v250 = vpop.xlane.xlu0 %249
    %v251 = vsub.f32 %v242, %v248
    %v252 = vsub.f32 %v244, %v250
    %vm253 = vcmask 7168
    %v254 = vsel %vm253, %v251, 0.0
    %v255 = vsel %vm253, %v252, 0.0
    %v256 = vadd.f32 %v254, %v255
    %257 = vadd.xlane.f32.xlu0 %v256
    %v258 = vpop.xlane.xlu0 %257
    %v259 = vrot.slane %v258, 4
    %v260 = vadd.f32 %v258, %v259
    %v261 = vrot.slane %v260, 2
    %v262 = vadd.f32 %v260, %v261
    %v263 = vrot.slane %v262, 1
    %v264 = vadd.f32 %v262, %v263
    %s265 = vtos %v264
    %s266 = smul.f32 %s265, 0.0625
    %s267 = scalar_lea.smem [#allocation7], 0
    %268 = sst [smem:[%s267]] %s266
    // Predicated region
    $region18: #{ecgclip_forward.1} parent=1 // pred_check
      _
    $region19: #{ecgclip_forward.1} parent=1 // pred_check_branch
      %270 = sbr.rel (0) target = $region21
    $region20: #{ecgclip_forward.1} parent=1 // pred_region
      %s272 = ssub.s32 128, 128
      %273 = vsyncadd [#allocation3], %s272
      %s275 = sshll.u32 [#allocation2], 4
      %s276 = int_to_ptr.vmem [resolvable:$true] %s275
      %278 = dma.vmem_to_hbm [thread:$0]  %s276, 128, %s4, [#allocation3]
    $region21: #{ecgclip_forward.1} parent=1 // pred_fallthru
      _
    // Predicated region
    $region22: #{ecgclip_forward.1} parent=1 // pred_check
      _
    $region23: #{ecgclip_forward.1} parent=1 // pred_check_branch
      %280 = sbr.rel (0) target = $region25
    $region24: #{ecgclip_forward.1} parent=1 // pred_region
      %s282 = ssub.s32 128, 128
      %283 = vsyncadd [#allocation6], %s282
      %s285 = sshll.u32 [#allocation5], 4
      %s286 = int_to_ptr.vmem [resolvable:$true] %s285
      %288 = dma.vmem_to_hbm [thread:$0]  %s286, 128, %s5, [#allocation6]
    $region25: #{ecgclip_forward.1} parent=1 // pred_fallthru
      _
    // Predicated region
    $region26: #{ecgclip_forward.1} parent=1 // pred_check
      _
    $region27: #{ecgclip_forward.1} parent=1 // pred_check_branch
      %290 = sbr.rel (0) target = $region29
    $region28: #{ecgclip_forward.1} parent=1 // pred_region
      %s292 = ssub.s32 16, 16
      %293 = vsyncadd [#allocation4], %s292
      %296 = dma.smem_to_hbm [#allocation7], 16, %s6, [#allocation4]
    $region29: #{ecgclip_forward.1} parent=1 // pred_fallthru
      _
    // Predicated region
    $region30: #{ecgclip_forward.1} parent=1 // pred_check
      _
    $region31: #{ecgclip_forward.1} parent=1 // pred_check_branch
      %298 = sbr.rel (0) target = $region33
    $region32: #{ecgclip_forward.1} parent=1 // pred_region
      %299 = dma.done [#allocation3], 128
    $region33: #{ecgclip_forward.1} parent=1 // pred_fallthru
      _
    // Predicated region
    $region34: #{ecgclip_forward.1} parent=1 // pred_check
      _
    $region35: #{ecgclip_forward.1} parent=1 // pred_check_branch
      %301 = sbr.rel (0) target = $region37
    $region36: #{ecgclip_forward.1} parent=1 // pred_region
      %302 = dma.done [#allocation6], 128
    $region37: #{ecgclip_forward.1} parent=1 // pred_fallthru
      _
    // Predicated region
    $region38: #{ecgclip_forward.1} parent=1 // pred_check
      _
    $region39: #{ecgclip_forward.1} parent=1 // pred_check_branch
      %304 = sbr.rel (0) target = $region41
    $region40: #{ecgclip_forward.1} parent=1 // pred_region
      %305 = dma.done [#allocation4], 16
    $region41: #{ecgclip_forward.1} parent=1 // pred_fallthru
      _
    %306 = sfence
    %307 = vsyncpa [#allocation3], 1
    %308 = vsyncpa [#allocation6], 1
    %309 = vsyncpa [#allocation4], 1

</llo_original>
